<compile_context>
chip_gen: v5e
topology: v5e:2x2
jax: 0.10.0
libtpu: 0.0.40
codegen_flags: <defaults>
</compile_context>

<pallas_src>
import math

import jax
import jax.numpy as jnp
from jax.experimental import pallas as pl
from jax.experimental.pallas import tpu as pltpu

_LANE = 128
# Total double-buffered pipeline VMEM budget (all inputs + output, x2 buffers).
# <= ~24 MiB keeps headroom on v7x (64 MiB physical / 32 MiB scoped default)
# while being far larger than the old 512 KiB tiles on v5e/v6e.
_VMEM_PIPELINE_BUDGET = 24 * 1024 * 1024
# Raise v5e's 16 MiB scoped-VMEM default; still within every chip's physical.
_VMEM_LIMIT_BYTES = 32 * 1024 * 1024


def _round_up(x, m):
    return (x + m - 1) // m * m


def _round_down(x, m):
    return (x // m) * m


def _sublane_multiple(dtype) -> int:
    """Minimum sublane multiple for a dtype: 8 for 4-byte, 16 for bf16/fp16,
    32 for int8/fp8 — sub-32-bit dtypes pack along sublanes."""
    itemsize = jnp.dtype(dtype).itemsize
    return 8 * max(1, 4 // itemsize)


def _acc_dtype_for(out_dtype):
    """Accumulation dtype used inside the kernel (widening is free on VPU)."""
    dt = jnp.dtype(out_dtype)
    if dt.itemsize >= 4:
        return out_dtype
    if jnp.issubdtype(dt, jnp.floating):
        return jnp.float32
    if jnp.issubdtype(dt, jnp.integer):
        return jnp.int32
    return out_dtype


def _make_merge_kernel(n_inputs, acc_dtype):
    def kernel(*refs):
        out_ref = refs[n_inputs]
        acc = refs[0][...].astype(acc_dtype)
        for r in refs[1:n_inputs]:
            acc = acc + r[...].astype(acc_dtype)
        out_ref[...] = acc.astype(out_ref.dtype)
    return kernel


def _merge_streams(streams, out_dtype, donate_input=False):
    """Sum 2-3 equal-shape streams with a row-tiled, lane-dense Pallas kernel.

    Inputs stay in their native dtypes (promotion happens in-kernel)."""
    orig_shape = streams[0].shape
    total = math.prod(orig_shape)
    last = orig_shape[-1] if orig_shape else 1

    padded = False
    if last % _LANE == 0:
        # Native last dim as the lane axis: widest unmasked stores, pure
        # reshape (merge leading dims), no copies.
        lane = last
        flats = [s.reshape(-1, lane) for s in streams]
    elif total % _LANE == 0:
        lane = _LANE
        flats = [s.reshape(-1, lane) for s in streams]
    else:
        # TODO(synk): rare lane-remainder fallback — pads each stream by <128
        # elements (extra HBM copy) for sizes not a multiple of 128.
        lane = _LANE
        padded_total = _round_up(total, _LANE)
        padded = True
        flats = [
            jnp.pad(s.reshape(-1), (0, padded_total - total)).reshape(-1, lane)
            for s in streams
        ]

    rows = flats[0].shape[0]
    acc_dtype = _acc_dtype_for(out_dtype)

    # Dtype-aware sublane rounding: strictest packing among all operands.
    sub = max(_sublane_multiple(out_dtype),
              *(_sublane_multiple(s.dtype) for s in streams))

    # Largest row tile that keeps the double-buffered pipeline under budget
    # (inputs counted in their native dtypes + the output dtype).
    bytes_per_row = lane * (sum(jnp.dtype(s.dtype).itemsize for s in streams)
                            + jnp.dtype(out_dtype).itemsize)
    tm_budget = max(1, _VMEM_PIPELINE_BUDGET // (2 * bytes_per_row))

    if rows <= tm_budget:
        # Full-extent block: always a legal block shape, single grid step.
        tm = rows
    else:
        tm = max(sub, _round_down(tm_budget, sub))

    grid = (pl.cdiv(rows, tm),)
    spec = pl.BlockSpec((tm, lane), lambda i: (i, 0))

    # Optional buffer donation: only when dtypes match and no padding copy was
    # made.  Off by default — if the caller's buffer is not donatable, XLA may
    # insert a defensive copy, which would add HBM traffic.
    io_aliases = {}
    if donate_input and not padded and streams[0].dtype == jnp.dtype(out_dtype):
        io_aliases = {0: 0}

    out = pl.pallas_call(
        _make_merge_kernel(len(streams), acc_dtype),
        out_shape=jax.ShapeDtypeStruct((rows, lane), out_dtype),
        grid=grid,
        in_specs=[spec] * len(streams),
        out_specs=spec,
        input_output_aliases=io_aliases,
        compiler_params=pltpu.CompilerParams(
            dimension_semantics=("parallel",),
            vmem_limit_bytes=_VMEM_LIMIT_BYTES,
        ),
    )(*flats)

    if padded:
        out = out.reshape(-1)[:total]
    return out.reshape(orig_shape)


def ensemble_startup(input_stream, ensemble_stream=None, recursive_stream=None,
                     auxiliary_stream=None, donate_input=False):
    """Concrete EnsembleStartup forward: merge incoming streams into the new
    per-subinstance stream.

    input_stream:     [B, S, H]
    ensemble_stream:  [B, S, H] or None (dropped, NOT replaced by zeros)
    recursive_stream: [B, S, H] or None (dropped, NOT replaced by zeros)
    auxiliary_stream: accepted but unused (as in the abstract interface)
    returns:          [B, S, H]
    """
    streams = [input_stream]
    if ensemble_stream is not None:
        if ensemble_stream.shape != input_stream.shape:
            raise ValueError("ensemble_stream shape mismatch")
        streams.append(ensemble_stream)
    if recursive_stream is not None:
        if recursive_stream.shape != input_stream.shape:
            raise ValueError("recursive_stream shape mismatch")
        streams.append(recursive_stream)

    if len(streams) == 1:
        # Nothing to merge: move zero bytes.
        return input_stream

    out_dtype = jnp.result_type(*(s.dtype for s in streams))
    return _merge_streams(streams, out_dtype, donate_input=donate_input)


if __name__ == "__main__":
    key = jax.random.PRNGKey(0)
    k1, k2, k3, k4 = jax.random.split(key, 4)

    B, S, H = 2, 8, 32  # small shapes consistent with a stream tensor
    input_stream = jax.random.normal(k1, (B, S, H), dtype=jnp.float32)
    ensemble_stream = jax.random.normal(k2, (B, S, H), dtype=jnp.float32)
    recursive_stream = jax.random.normal(k3, (B, S, H), dtype=jnp.float32)

    # 3-stream merge
    out3 = jax.block_until_ready(
        ensemble_startup(input_stream, ensemble_stream, recursive_stream))
    ref3 = input_stream + ensemble_stream + recursive_stream
    assert out3.shape == (B, S, H)
    assert jnp.allclose(out3, ref3, atol=1e-6), "3-stream mismatch vs reference"

    # 2-stream merge (missing recursive_stream is dropped, not zero-filled)
    out2 = jax.block_until_ready(
        ensemble_startup(input_stream, ensemble_stream, None))
    ref2 = input_stream + ensemble_stream
    assert jnp.allclose(out2, ref2, atol=1e-6), "2-stream mismatch vs reference"

    # 1-stream path: pass-through, no kernel launch
    out1 = jax.block_until_ready(ensemble_startup(input_stream))
    assert jnp.allclose(out1, input_stream), "1-stream passthrough mismatch"

    # Native-lane path (H % 128 == 0) with mixed dtypes: bf16 input is passed
    # in native dtype and promoted to f32 inside the kernel.
    Hn = 128
    a = jax.random.normal(k1, (B, 4, Hn), dtype=jnp.float32)
    b = jax.random.normal(k4, (B, 4, Hn), dtype=jnp.bfloat16)
    out_m = jax.block_until_ready(ensemble_startup(a, b))
    ref_m = a + b.astype(jnp.float32)
    assert out_m.dtype == jnp.float32
    assert jnp.allclose(out_m, ref_m, atol=1e-6), "mixed-dtype mismatch vs reference"

    print("KERNEL_OK")
</pallas_src>

<mosaic_0001>
module attributes {stable_mosaic.version = 11 : i64} {
  func.func @kernel(%arg0: i32, %arg1: memref<4x128xf32, #tpu.memory_space<vmem>>, %arg2: memref<4x128xf32, #tpu.memory_space<vmem>>, %arg3: memref<4x128xf32, #tpu.memory_space<vmem>>, %arg4: memref<4x128xf32, #tpu.memory_space<vmem>>) attributes {dimension_semantics = [#tpu.dimension_semantics<parallel>], iteration_bounds = array<i64: 1>, scalar_prefetch = 0 : i64, scratch_operands = 0 : i64, tpu.core_type = #tpu.core_type<tc>, window_params = [{transform_indices = @transform_0, window_bounds = array<i64: 4, 128>}, {transform_indices = @transform_1, window_bounds = array<i64: 4, 128>}, {transform_indices = @transform_2, window_bounds = array<i64: 4, 128>}, {transform_indices = @transform_3, window_bounds = array<i64: 4, 128>}]} {
    %c0 = arith.constant 0 : index
    %c0_0 = arith.constant 0 : index
    %0 = vector.load %arg1[%c0, %c0_0] : memref<4x128xf32, #tpu.memory_space<vmem>>, vector<4x128xf32>
    %c0_1 = arith.constant 0 : index
    %c0_2 = arith.constant 0 : index
    %1 = vector.load %arg2[%c0_1, %c0_2] : memref<4x128xf32, #tpu.memory_space<vmem>>, vector<4x128xf32>
    %2 = arith.addf %0, %1 : vector<4x128xf32>
    %c0_3 = arith.constant 0 : index
    %c0_4 = arith.constant 0 : index
    %3 = vector.load %arg3[%c0_3, %c0_4] : memref<4x128xf32, #tpu.memory_space<vmem>>, vector<4x128xf32>
    %4 = arith.addf %2, %3 : vector<4x128xf32>
    %c0_5 = arith.constant 0 : index
    %c0_6 = arith.constant 0 : index
    %5 = vector.load %arg4[%c0_5, %c0_6] : memref<4x128xf32, #tpu.memory_space<vmem>>, vector<4x128xf32>
    tpu.vector_store %arg4[%c0_5, %c0_6], %4 {strides = array<i32>} : memref<4x128xf32, #tpu.memory_space<vmem>>, vector<4x128xf32>,
    return
  }
  func.func @transform_0(%arg0: i32) -> (i32, i32) {
    %c0_i32 = arith.constant 0 : i32
    %c0_i32_0 = arith.constant 0 : i32
    return %arg0, %c0_i32 : i32, i32
  }
  func.func @transform_1(%arg0: i32) -> (i32, i32) {
    %c0_i32 = arith.constant 0 : i32
    %c0_i32_0 = arith.constant 0 : i32
    return %arg0, %c0_i32 : i32, i32
  }
  func.func @transform_2(%arg0: i32) -> (i32, i32) {
    %c0_i32 = arith.constant 0 : i32
    %c0_i32_0 = arith.constant 0 : i32
    return %arg0, %c0_i32 : i32, i32
  }
  func.func @transform_3(%arg0: i32) -> (i32, i32) {
    %c0_i32 = arith.constant 0 : i32
    %c0_i32_0 = arith.constant 0 : i32
    return %arg0, %c0_i32 : i32, i32
  }
}

</mosaic_0001>

<llo_original>
// kernel: tpu_custom_call.1
$region0: #{tpu_custom_call.1}
  #allocation0 [shape = 'u32[]', space=smem, size = 0x4, offset = 0x4, fixed_abs, tag = 'smem constant byte address 0x4 - core index']
  #allocation1 [shape = 'u32[72,128]{1,0:T(1,128)}', space=vmem, size = 0x9000, scoped, tag = 'internal scratch']
  %s0 = inlined_call_operand.hbm [shape: f32[4,128], index: 0, kind: input, shape index: {}]
  %s1 = inlined_call_operand.hbm [shape: f32[4,128], index: 1, kind: input, shape index: {}]
  %s2 = inlined_call_operand.hbm [shape: f32[4,128], index: 2, kind: input, shape index: {}]
  %s3 = inlined_call_operand.hbm [shape: f32[4,128], index: 3, kind: output, shape index: {}]
  %s4 = sld [smem:[#allocation0]]
  $region34: #{tpu_custom_call.1} parent=0
    _
  %s6 = ssub.s32 1, %s4
  %s7 = scalar_select 0, %s6, %s4
  $region1: #{tpu_custom_call.1} parent=0
    #allocation2 [shape = 'u8[2048]{0}', space=vmem, size = 0x800, scoped, tag = 'input window, operand 0, single buffered']
    #allocation3 [shape = 's32[1]{0}', space=sflag, size = 0x4, scoped, tag = 'scoped memory for tpu_custom_call.1']
    #allocation4 [shape = 's32[1]{0}', space=sflag, size = 0x4, scoped, tag = 'scoped memory for tpu_custom_call.1']
    #allocation5 [shape = 'u8[2048]{0}', space=vmem, size = 0x800, scoped, tag = 'input window, operand 1, single buffered']
    #allocation6 [shape = 's32[1]{0}', space=sflag, size = 0x4, scoped, tag = 'scoped memory for tpu_custom_call.1']
    #allocation7 [shape = 'u8[2048]{0}', space=vmem, size = 0x800, scoped, tag = 'input window, operand 2, single buffered']
    #allocation8 [shape = 'u8[2048]{0}', space=vmem, size = 0x800, scoped, tag = 'output window, operand 0, single buffered']
    %8 = vsyncpa [#allocation3], 0
    %9 = vsyncpa [#allocation6], 0
    %10 = vsyncpa [#allocation4], 0
    // Predicated region
    $region2: #{tpu_custom_call.1} parent=1 // pred_check
      _
    $region3: #{tpu_custom_call.1} parent=1 // pred_check_branch
      %12 = sbr.rel (0) target = $region5
    $region4: #{tpu_custom_call.1} parent=1 // pred_region
      %14 = vsyncadd [#allocation3], 0
      %s16 = sshll.u32 %s0, 4
      %s17 = int_to_ptr.hbm [resolvable:$true] %s16
      %s18 = sshll.u32 [#allocation2], 4
      %s19 = int_to_ptr.vmem [resolvable:$true] %s18
      %21 = dma.hbm_to_vmem [thread:$0]  %s17, 64, %s19, [#allocation3]
    $region5: #{tpu_custom_call.1} parent=1 // pred_fallthru
      _
    // Predicated region
    $region6: #{tpu_custom_call.1} parent=1 // pred_check
      _
    $region7: #{tpu_custom_call.1} parent=1 // pred_check_branch
      %23 = sbr.rel (0) target = $region9
    $region8: #{tpu_custom_call.1} parent=1 // pred_region
      %25 = vsyncadd [#allocation6], 0
      %s27 = sshll.u32 %s1, 4
      %s28 = int_to_ptr.hbm [resolvable:$true] %s27
      %s29 = sshll.u32 [#allocation5], 4
      %s30 = int_to_ptr.vmem [resolvable:$true] %s29
      %32 = dma.hbm_to_vmem [thread:$0]  %s28, 64, %s30, [#allocation6]
    $region9: #{tpu_custom_call.1} parent=1 // pred_fallthru
      _
    // Predicated region
    $region10: #{tpu_custom_call.1} parent=1 // pred_check
      _
    $region11: #{tpu_custom_call.1} parent=1 // pred_check_branch
      %34 = sbr.rel (0) target = $region13
    $region12: #{tpu_custom_call.1} parent=1 // pred_region
      %36 = vsyncadd [#allocation6], 0
      %s38 = sshll.u32 %s2, 4
      %s39 = int_to_ptr.hbm [resolvable:$true] %s38
      %s40 = sshll.u32 [#allocation7], 4
      %s41 = int_to_ptr.vmem [resolvable:$true] %s40
      %43 = dma.hbm_to_vmem [thread:$0]  %s39, 64, %s41, [#allocation6]
    $region13: #{tpu_custom_call.1} parent=1 // pred_fallthru
      _
    // Predicated region
    $region14: #{tpu_custom_call.1} parent=1 // pred_check
      _
    $region15: #{tpu_custom_call.1} parent=1 // pred_check_branch
      %45 = sbr.rel (0) target = $region17
    $region16: #{tpu_custom_call.1} parent=1 // pred_region
      %47 = dma.done [#allocation3], 64
    $region17: #{tpu_custom_call.1} parent=1 // pred_fallthru
      _
    // Predicated region
    $region18: #{tpu_custom_call.1} parent=1 // pred_check
      _
    $region19: #{tpu_custom_call.1} parent=1 // pred_check_branch
      %49 = sbr.rel (0) target = $region21
    $region20: #{tpu_custom_call.1} parent=1 // pred_region
      %51 = dma.done [#allocation6], 64
    $region21: #{tpu_custom_call.1} parent=1 // pred_fallthru
      _
    // Predicated region
    $region22: #{tpu_custom_call.1} parent=1 // pred_check
      _
    $region23: #{tpu_custom_call.1} parent=1 // pred_check_branch
      %53 = sbr.rel (0) target = $region25
    $region24: #{tpu_custom_call.1} parent=1 // pred_region
      %55 = dma.done [#allocation6], 64
    $region25: #{tpu_custom_call.1} parent=1 // pred_fallthru
      _
    %v56 = vld [vmem:[#allocation2] sm:$0xf]
    %v57 = vld [vmem:[#allocation5] sm:$0xf]
    %v58 = vadd.f32 %v56, %v57
    %v59 = vld [vmem:[#allocation7] sm:$0xf]
    %v60 = vadd.f32 %v58, %v59
    %61 = vst [vmem:[#allocation8] sm:$0xf] %v60
    // Predicated region
    $region26: #{tpu_custom_call.1} parent=1 // pred_check
      _
    $region27: #{tpu_custom_call.1} parent=1 // pred_check_branch
      %63 = sbr.rel (0) target = $region29
    $region28: #{tpu_custom_call.1} parent=1 // pred_region
      %65 = vsyncadd [#allocation4], 0
      %s67 = sshll.u32 [#allocation8], 4
      %s68 = int_to_ptr.vmem [resolvable:$true] %s67
      %s69 = sshll.u32 %s3, 4
      %s70 = int_to_ptr.hbm [resolvable:$true] %s69
      %72 = dma.vmem_to_hbm [thread:$0]  %s68, 64, %s70, [#allocation4]
    $region29: #{tpu_custom_call.1} parent=1 // pred_fallthru
      _
    // Predicated region
    $region30: #{tpu_custom_call.1} parent=1 // pred_check
      _
    $region31: #{tpu_custom_call.1} parent=1 // pred_check_branch
      %74 = sbr.rel (0) target = $region33
    $region32: #{tpu_custom_call.1} parent=1 // pred_region
      %76 = dma.done [#allocation4], 64
    $region33: #{tpu_custom_call.1} parent=1 // pred_fallthru
      _
    %77 = vsyncpa [#allocation3], 1
    %78 = vsyncpa [#allocation6], 1
    %79 = vsyncpa [#allocation4], 1

</llo_original>
